<compile_context>
chip_gen: v7x
topology: tpu7x:2x2x1
jax: 0.10.0
libtpu: 0.0.40
codegen_flags: <defaults>
</compile_context>

<pallas_src>
from functools import partial

import jax
import jax.numpy as jnp
from jax.experimental import pallas as pl
from jax.experimental.pallas import tpu as pltpu


# ------------------------------- helpers ----------------------------------- #

def _round_up(x, m):
    return ((x + m - 1) // m) * m


def _choose_m_tiling(M):
    """Rows per grid step: as large as possible (fill the 256-row MXU on
    v6e/v7x) while keeping >= 2 grid steps so both v7x TensorCores get work."""
    tile_m = min(256, _round_up(M, 8))
    if _round_up(M, tile_m) // tile_m < 2 and M > 8:
        tile_m = _round_up((M + 1) // 2, 8)
    m_pad = _round_up(M, tile_m)
    return tile_m, m_pad


def _extract_patches(pixel_values, patch_size):
    """(B, C, H, W) -> (B * num_patches, C * ph * pw), patch features ordered
    (c, kh, kw) to match the Conv2d weight layout (O, C, kh, kw)."""
    B, C, H, W = pixel_values.shape
    ph, pw = patch_size
    Hp, Wp = H // ph, W // pw
    x = pixel_values.reshape(B, C, Hp, ph, Wp, pw)
    x = x.transpose(0, 2, 4, 1, 3, 5)              # (B, Hp, Wp, C, ph, pw)
    return x.reshape(B * Hp * Wp, C * ph * pw)


# ------------------------------- the kernel -------------------------------- #

def _patch_embed_kernel(x_ref, w_ref, b_ref, o_ref):
    # x_ref: (tile_m, K_pad)   w_ref: (K_pad, hidden_pad)   b_ref: (1, hidden_pad)
    acc = jnp.dot(x_ref[...], w_ref[...], preferred_element_type=jnp.float32)
    o_ref[...] = (acc + b_ref[...]).astype(o_ref.dtype)


# ------------------------------ host wrapper ------------------------------- #

def vit_diffmae_patch_embeddings(pixel_values, weight, bias, image_size,
                                 patch_size, *, use_bf16=False):
    """Pallas equivalent of ViTDiffMAEPatchEmbeddings.forward.

    pixel_values: (B, C, H, W) float32
    weight:       (hidden, C, ph, pw) float32  (torch Conv2d layout)
    bias:         (hidden,) float32
    returns:      (B, num_patches, hidden) float32
    """
    B, C, H, W = pixel_values.shape
    ph, pw = patch_size
    hidden = weight.shape[0]

    # Same validation as the PyTorch module (host-side, shapes are static).
    if C != weight.shape[1]:
        raise ValueError("Make sure that the channel dimension of the pixel "
                         "values match with the one set in the configuration.")
    if H != image_size[0] or W != image_size[1]:
        raise ValueError(f"Input image size ({H}*{W}) doesn't match model "
                         f"({image_size[0]}*{image_size[1]}).")

    Hp, Wp = H // ph, W // pw
    N = Hp * Wp
    K = C * ph * pw
    M = B * N

    patches = _extract_patches(pixel_values, (ph, pw))          # (M, K)
    w_mat = weight.reshape(hidden, K).T                         # (K, hidden)
    b_row = bias.reshape(1, hidden).astype(jnp.float32)

    if use_bf16:
        # bf16 operands run at native MXU rate on v5e/v6e/v7x and halve the
        # patch/weight HBM+VMEM traffic; accumulation stays f32 in the kernel.
        patches = patches.astype(jnp.bfloat16)
        w_mat = w_mat.astype(jnp.bfloat16)

    # Lane/sublane alignment: zero-pad K and hidden up to multiples of 128 so
    # every vector load/store in the kernel is unmasked. Zero rows/cols do not
    # change the matmul result; padded hidden columns are sliced off below.
    K_pad = _round_up(K, 128)
    H_pad = _round_up(hidden, 128)
    if K_pad != K:
        patches = jnp.pad(patches, ((0, 0), (0, K_pad - K)))
        w_mat = jnp.pad(w_mat, ((0, K_pad - K), (0, 0)))
    if H_pad != hidden:
        w_mat = jnp.pad(w_mat, ((0, 0), (0, H_pad - hidden)))
        b_row = jnp.pad(b_row, ((0, 0), (0, H_pad - hidden)))

    tile_m, M_pad = _choose_m_tiling(M)
    if M_pad != M:
        patches = jnp.pad(patches, ((0, M_pad - M), (0, 0)))

    grid = (M_pad // tile_m,)
    in_specs = [
        pl.BlockSpec((tile_m, K_pad), lambda i: (i, 0)),   # patch rows (streamed)
        pl.BlockSpec((K_pad, H_pad), lambda i: (0, 0)),    # weight (resident)
        pl.BlockSpec((1, H_pad), lambda i: (0, 0)),        # bias   (resident)
    ]
    out_spec = pl.BlockSpec((tile_m, H_pad), lambda i: (i, 0))

    flops = 2 * M_pad * K_pad * H_pad
    bytes_accessed = (patches.size * patches.dtype.itemsize
                      + w_mat.size * w_mat.dtype.itemsize
                      + b_row.size * 4 + M_pad * H_pad * 4)

    out = pl.pallas_call(
        _patch_embed_kernel,
        out_shape=jax.ShapeDtypeStruct((M_pad, H_pad), jnp.float32),
        grid_spec=pltpu.PrefetchScalarGridSpec(
            num_scalar_prefetch=0,
            grid=grid,
            in_specs=in_specs,
            out_specs=out_spec,
        ),
        compiler_params=pltpu.CompilerParams(
            dimension_semantics=("parallel",),
            vmem_limit_bytes=64 * 1024 * 1024,
        ),
        cost_estimate=pl.CostEstimate(
            flops=flops, transcendentals=0, bytes_accessed=bytes_accessed),
    )(patches, w_mat, b_row)

    return out[:M, :hidden].reshape(B, N, hidden)


# ------------------------------ pure-JAX reference ------------------------- #

def ref_patch_embeddings(pixel_values, weight, bias, patch_size):
    # Mirrors torch: Conv2d(kernel=stride=patch).flatten(2).transpose(1, 2)
    out = jax.lax.conv_general_dilated(
        pixel_values, weight,
        window_strides=patch_size, padding="VALID",
        dimension_numbers=("NCHW", "OIHW", "NCHW"))
    out = out + bias[None, :, None, None]
    B, Hd, Hp, Wp = out.shape
    return out.reshape(B, Hd, Hp * Wp).transpose(0, 2, 1)


# ----------------------------------- main ----------------------------------- #

if __name__ == "__main__":
    key = jax.random.PRNGKey(0)

    # --- main config: batch=2, channels=3, 16x16 image, 4x4 patches, hidden=128
    B, C = 2, 3
    IMG, PATCH = 16, 4            # -> 16 patches, K = 48 (padded to 128 inside)
    HIDDEN = 128

    kx, kw, kb = jax.random.split(key, 3)
    pixel_values = jax.random.normal(kx, (B, C, IMG, IMG), dtype=jnp.float32)
    weight = (0.02 * jax.random.normal(kw, (HIDDEN, C, PATCH, PATCH))).astype(jnp.float32)
    bias = (0.01 * jax.random.normal(kb, (HIDDEN,))).astype(jnp.float32)

    N = (IMG // PATCH) * (IMG // PATCH)

    # f32 path (exact parity with the torch Conv2d semantics)
    out = jax.block_until_ready(vit_diffmae_patch_embeddings(
        pixel_values, weight, bias, (IMG, IMG), (PATCH, PATCH)))
    ref = jax.block_until_ready(
        ref_patch_embeddings(pixel_values, weight, bias, (PATCH, PATCH)))

    assert out.shape == (B, N, HIDDEN) and out.dtype == jnp.float32
    assert jnp.allclose(out, ref, atol=2e-4, rtol=2e-4), (
        f"f32 path: max abs diff {jnp.max(jnp.abs(out - ref))}")

    # bf16-operand path (native-rate MXU), f32 accumulation — looser tolerance
    out_bf16 = jax.block_until_ready(vit_diffmae_patch_embeddings(
        pixel_values, weight, bias, (IMG, IMG), (PATCH, PATCH), use_bf16=True))
    assert out_bf16.shape == (B, N, HIDDEN) and out_bf16.dtype == jnp.float32
    assert jnp.allclose(out_bf16, ref, atol=2e-2, rtol=2e-2), (
        f"bf16 path: max abs diff {jnp.max(jnp.abs(out_bf16 - ref))}")

    # non-lane-aligned hidden size exercises the padding/slicing path
    HIDDEN2 = 96
    kw2, kb2 = jax.random.split(kb, 2)
    weight2 = (0.02 * jax.random.normal(kw2, (HIDDEN2, C, PATCH, PATCH))).astype(jnp.float32)
    bias2 = (0.01 * jax.random.normal(kb2, (HIDDEN2,))).astype(jnp.float32)
    out2 = jax.block_until_ready(vit_diffmae_patch_embeddings(
        pixel_values, weight2, bias2, (IMG, IMG), (PATCH, PATCH)))
    ref2 = jax.block_until_ready(
        ref_patch_embeddings(pixel_values, weight2, bias2, (PATCH, PATCH)))
    assert out2.shape == (B, N, HIDDEN2)
    assert jnp.allclose(out2, ref2, atol=2e-4, rtol=2e-4), (
        f"hidden=96 path: max abs diff {jnp.max(jnp.abs(out2 - ref2))}")

    print("KERNEL_OK")
</pallas_src>

<mosaic_0001>
module attributes {stable_mosaic.version = 11 : i64} {
  func.func @_patch_embed_kernel(%arg0: i32, %arg1: memref<16x128xf32, #tpu.memory_space<vmem>>, %arg2: memref<128x128xf32, #tpu.memory_space<vmem>>, %arg3: memref<1x128xf32, #tpu.memory_space<vmem>>, %arg4: memref<16x128xf32, #tpu.memory_space<vmem>>) attributes {dimension_semantics = [#tpu.dimension_semantics<parallel>], iteration_bounds = array<i64: 2>, scalar_prefetch = 0 : i64, scratch_operands = 0 : i64, tpu.core_type = #tpu.core_type<tc>, window_params = [{transform_indices = @transform_0, window_bounds = array<i64: 16, 128>}, {pipeline_mode = #tpu.pipeline_mode<synchronous>, transform_indices = @transform_1, window_bounds = array<i64: 128, 128>}, {pipeline_mode = #tpu.pipeline_mode<synchronous>, transform_indices = @transform_2, window_bounds = array<i64: 1, 128>}, {transform_indices = @transform_3, window_bounds = array<i64: 16, 128>}]} {
    %c0 = arith.constant 0 : index
    %c0_0 = arith.constant 0 : index
    %0 = vector.load %arg1[%c0, %c0_0] : memref<16x128xf32, #tpu.memory_space<vmem>>, vector<16x128xf32>
    %c0_1 = arith.constant 0 : index
    %c0_2 = arith.constant 0 : index
    %1 = vector.load %arg2[%c0_1, %c0_2] : memref<128x128xf32, #tpu.memory_space<vmem>>, vector<128x128xf32>
    %cst = arith.constant dense<0.000000e+00> : vector<16x128xf32>
    %2 = tpu.matmul %0, %1, %cst {dimension_numbers = #tpu.dot_dimension_numbers<[1], [0], [0], [1], [0, 0, 1, 1], [], []>} : vector<16x128xf32>, vector<128x128xf32>, vector<16x128xf32> -> vector<16x128xf32>
    %c0_3 = arith.constant 0 : index
    %c0_4 = arith.constant 0 : index
    %3 = vector.load %arg3[%c0_3, %c0_4] : memref<1x128xf32, #tpu.memory_space<vmem>>, vector<1x128xf32>
    %4 = vector.broadcast %3 : vector<1x128xf32> to vector<16x128xf32>
    %5 = arith.addf %2, %4 : vector<16x128xf32>
    %c0_5 = arith.constant 0 : index
    %c0_6 = arith.constant 0 : index
    %6 = vector.load %arg4[%c0_5, %c0_6] : memref<16x128xf32, #tpu.memory_space<vmem>>, vector<16x128xf32>
    tpu.vector_store %arg4[%c0_5, %c0_6], %5 {strides = array<i32>} : memref<16x128xf32, #tpu.memory_space<vmem>>, vector<16x128xf32>,
    return
  }
  func.func @transform_0(%arg0: i32) -> (i32, i32) {
    %c0_i32 = arith.constant 0 : i32
    %c0_i32_0 = arith.constant 0 : i32
    return %arg0, %c0_i32 : i32, i32
  }
  func.func @transform_1(%arg0: i32) -> (i32, i32) {
    %c0_i32 = arith.constant 0 : i32
    %c0_i32_0 = arith.constant 0 : i32
    %c0_i32_1 = arith.constant 0 : i32
    return %c0_i32, %c0_i32_0 : i32, i32
  }
  func.func @transform_2(%arg0: i32) -> (i32, i32) {
    %c0_i32 = arith.constant 0 : i32
    %c0_i32_0 = arith.constant 0 : i32
    %c0_i32_1 = arith.constant 0 : i32
    return %c0_i32, %c0_i32_0 : i32, i32
  }
  func.func @transform_3(%arg0: i32) -> (i32, i32) {
    %c0_i32 = arith.constant 0 : i32
    %c0_i32_0 = arith.constant 0 : i32
    return %arg0, %c0_i32 : i32, i32
  }
}

</mosaic_0001>

<llo_original>
// kernel: tpu_custom_call.1
$region0: #{tpu_custom_call.1}
  #allocation0 [shape = 'u32[]', space=smem, size = 0x4, offset = 0x4, fixed_abs, tag = 'smem constant byte address 0x4 - core index']
  #allocation1 [shape = 'u32[144,128]{1,0:T(1,128)}', space=vmem, size = 0x12000, scoped, tag = 'internal scratch']
  %s0 = inlined_call_operand.hbm [shape: f32[32,128], index: 0, kind: input, shape index: {}]
  %s1 = inlined_call_operand.hbm [shape: f32[128,128], index: 1, kind: input, shape index: {}]
  %s2 = inlined_call_operand.hbm [shape: f32[1,128], index: 2, kind: input, shape index: {}]
  %s3 = inlined_call_operand.hbm [shape: f32[32,128], index: 3, kind: output, shape index: {}]
  %s4 = sld [smem:[#allocation0]]
  $region57: #{tpu_custom_call.1} parent=0
    _
  %s6 = ssub.s32 1, %s4
  %s7 = scalar_select 0, %s6, %s4
  $region1: #{tpu_custom_call.1} parent=0
    #allocation2 [shape = 'u8[16384]{0}', space=vmem, size = 0x4000, scoped, tag = 'input window, operand 0']
    #allocation3 [shape = 's32[2]{0}', space=sflag, size = 0x8, scoped, tag = 'scoped memory for tpu_custom_call.1']
    #allocation4 [shape = 's32[2]{0}', space=sflag, size = 0x8, scoped, tag = 'scoped memory for tpu_custom_call.1']
    #allocation5 [shape = 'u8[65536]{0}', space=vmem, size = 0x10000, scoped, tag = 'input window, operand 1, single buffered']
    #allocation6 [shape = 's32[1]{0}', space=sflag, size = 0x4, scoped, tag = 'scoped memory for tpu_custom_call.1']
    #allocation7 [shape = 'u8[512]{0}', space=vmem, size = 0x400, scoped, tag = 'input window, operand 2, single buffered']
    #allocation8 [shape = 'u8[16384]{0}', space=vmem, size = 0x4000, scoped, tag = 'output window, operand 0']
    %8 = vsyncpa [#allocation3], 0
    %s9 = scalar_lea.sflag [#allocation3], 1
    %10 = vsyncpa %s9, 0
    %11 = vsyncpa [#allocation6], 0
    %12 = vsyncpa [#allocation4], 0
    %s13 = scalar_lea.sflag [#allocation4], 1
    %14 = vsyncpa %s13, 0
    loop: start=0, step=1, limit=4
    $region2: #{tpu_custom_call.1} parent=1 // loop_pre_header
      _
    $region3: #{tpu_custom_call.1} parent=1 // loop_header
      %s16 = sphi 0, %s20
      %p17 = scmp.ge.s32.totalorder %s16, 4
      %s26 = sphi 0, %s28
      %s29 = sphi 0, %s26
      %s30 = sphi 0, %s29
      %s46 = sphi 0, %s30
      %s50 = sphi 0, %s50
      %s52 = sphi 0, %s50
      %s53 = sphi 0, %s52
      %s67 = sphi 0, %s53
      %s71 = sphi 0, %s71
      %s73 = sphi 0, %s71
      %s74 = sphi 0, %s73
      %s88 = sphi 0, %s74
      %s94 = sphi 0, %s96
      %s97 = sphi 0, %s94
      %s98 = sphi 0, %s97
      %s114 = sphi 0, %s98
    $region4: #{tpu_custom_call.1} parent=1 // loop_header_branch
      %19 = sbr.rel (%p17) target = $region8
    $region5: #{tpu_custom_call.1} parent=1 // loop_body
      %s21 = ssub.s32 %s16, 1
      %s22 = ssub.s32 %s16, 2
      %s23 = sadd.s32 %s16, 1
      %s24 = ssub.s32 %s16, %s23
      %p25 = scmp.eq.s32.totalorder %s24, 0
      %s27 = sadd.s32 %s26, 1
      %s28 = scalar_select %p25, %s26, %s27
      %p31 = pneg %p25
      %p32 = scmp.eq.s32.totalorder %s16, 1
      %p33 = por %p31, %p32
      %p34 = scmp.ne.s32.totalorder %s26, %s29
      %p35 = scmp.eq.s32.totalorder %s16, 0
      %p36 = por %p34, %p35
      %p37 = scmp.ne.s32.totalorder %s26, %s29
      %p38 = scmp.eq.s32.totalorder %s21, 1
      %p39 = por %p37, %p38
      %p40 = scmp.ne.s32.totalorder %s29, %s30
      %p41 = scmp.eq.s32.totalorder %s21, 0
      %p42 = por %p40, %p41
      %p43 = scmp.ne.s32.totalorder %s29, %s30
      %p44 = scmp.eq.s32.totalorder %s22, 1
      %p45 = por %p43, %p44
      %p47 = scmp.ne.s32.totalorder %s30, %s46
      %p48 = scmp.eq.s32.totalorder %s22, 0
      %p49 = por %p47, %p48
      %s51 = sadd.s32 %s50, 1
      %p54 = scmp.eq.s32.totalorder %s16, 1
      %p55 = scmp.ne.s32.totalorder %s50, %s52
      %p56 = scmp.eq.s32.totalorder %s16, 0
      %p57 = por %p55, %p56
      %p58 = scmp.ne.s32.totalorder %s50, %s52
      %p59 = scmp.eq.s32.totalorder %s21, 1
      %p60 = por %p58, %p59
      %p61 = scmp.ne.s32.totalorder %s52, %s53
      %p62 = scmp.eq.s32.totalorder %s21, 0
      %p63 = por %p61, %p62
      %p64 = scmp.ne.s32.totalorder %s52, %s53
      %p65 = scmp.eq.s32.totalorder %s22, 1
      %p66 = por %p64, %p65
      %p68 = scmp.ne.s32.totalorder %s53, %s67
      %p69 = scmp.eq.s32.totalorder %s22, 0
      %p70 = por %p68, %p69
      %s72 = sadd.s32 %s71, 1
      %p75 = scmp.eq.s32.totalorder %s16, 1
      %p76 = scmp.ne.s32.totalorder %s71, %s73
      %p77 = scmp.eq.s32.totalorder %s16, 0
      %p78 = por %p76, %p77
      %p79 = scmp.ne.s32.totalorder %s71, %s73
      %p80 = scmp.eq.s32.totalorder %s21, 1
      %p81 = por %p79, %p80
      %p82 = scmp.ne.s32.totalorder %s73, %s74
      %p83 = scmp.eq.s32.totalorder %s21, 0
      %p84 = por %p82, %p83
      %p85 = scmp.ne.s32.totalorder %s73, %s74
      %p86 = scmp.eq.s32.totalorder %s22, 1
      %p87 = por %p85, %p86
      %p89 = scmp.ne.s32.totalorder %s74, %s88
      %p90 = scmp.eq.s32.totalorder %s22, 0
      %p91 = por %p89, %p90
      %s92 = ssub.s32 %s16, %s23
      %p93 = scmp.eq.s32.totalorder %s92, 0
      %s95 = sadd.s32 %s94, 1
      %s96 = scalar_select %p93, %s94, %s95
      %p99 = pneg %p93
      %p100 = scmp.eq.s32.totalorder %s16, 1
      %p101 = por %p99, %p100
      %p102 = scmp.ne.s32.totalorder %s94, %s97
      %p103 = scmp.eq.s32.totalorder %s16, 0
      %p104 = por %p102, %p103
      %p105 = scmp.ne.s32.totalorder %s94, %s97
      %p106 = scmp.eq.s32.totalorder %s21, 1
      %p107 = por %p105, %p106
      %p108 = scmp.ne.s32.totalorder %s97, %s98
      %p109 = scmp.eq.s32.totalorder %s21, 0
      %p110 = por %p108, %p109
      %p111 = scmp.ne.s32.totalorder %s97, %s98
      %p112 = scmp.eq.s32.totalorder %s22, 1
      %p113 = por %p111, %p112
      %p115 = scmp.ne.s32.totalorder %s98, %s114
      %p116 = scmp.eq.s32.totalorder %s22, 0
      %p117 = por %p115, %p116
      %p118 = scmp.le.s32.totalorder 1, %s16
      %p119 = scmp.lt.s32.totalorder %s16, 3
      %p120 = pnand %p118, %p119
      %p121 = pneg %p120
      // Predicated region
      $region9: #{tpu_custom_call.1} parent=5 // pred_check
        _
      $region10: #{tpu_custom_call.1} parent=5 // pred_check_branch
        %123 = sbr.rel (%p120) target = $region12
      $region11: #{tpu_custom_call.1} parent=5 // pred_region
        %s124 = ssub.s32 %s16, 1
        // Predicated region
        $region13: #{tpu_custom_call.1} parent=11 // pred_check
          %p125 = pneg %p63
        $region14: #{tpu_custom_call.1} parent=11 // pred_check_branch
          %127 = sbr.rel (%p125) target = $region16
        $region15: #{tpu_custom_call.1} parent=11 // pred_region
          %s129 = ssub.s32 2048, 2048
          %130 = vsyncadd [#allocation6], %s129
          %s131 = sshll.u32 [#allocation5], 4
          %s132 = int_to_ptr.vmem [resolvable:$true] %s131
          %137 = dma.hbm_to_vmem [thread:$0]  %s1, 2048, %s132, [#allocation6], 128, 128, 8
        $region16: #{tpu_custom_call.1} parent=11 // pred_fallthru
          _
        // Predicated region
        $region17: #{tpu_custom_call.1} parent=11 // pred_check
          %p138 = pneg %p84
        $region18: #{tpu_custom_call.1} parent=11 // pred_check_branch
          %140 = sbr.rel (%p138) target = $region20
        $region19: #{tpu_custom_call.1} parent=11 // pred_region
          %s142 = ssub.s32 16, 16
          %143 = vsyncadd [#allocation6], %s142
          %s145 = sshll.u32 [#allocation7], 4
          %s146 = int_to_ptr.vmem [resolvable:$true] %s145
          %148 = dma.hbm_to_vmem [thread:$0]  %s2, 16, %s146, [#allocation6]
        $region20: #{tpu_custom_call.1} parent=11 // pred_fallthru
          _
      $region12: #{tpu_custom_call.1} parent=5 // pred_fallthru
        _
      %p149 = scmp.lt.s32.totalorder %s16, 2
      // Predicated region
      $region21: #{tpu_custom_call.1} parent=5 // pred_check
        %p150 = pneg %p149
      $region22: #{tpu_custom_call.1} parent=5 // pred_check_branch
        %152 = sbr.rel (%p150) target = $region24
      $region23: #{tpu_custom_call.1} parent=5 // pred_region
        // Predicated region
        $region25: #{tpu_custom_call.1} parent=23 // pred_check
          %p153 = pneg %p36
        $region26: #{tpu_custom_call.1} parent=23 // pred_check_branch
          %155 = sbr.rel (%p153) target = $region28
        $region27: #{tpu_custom_call.1} parent=23 // pred_region
          %s156 = sand.u32 %s26, 1
          %s157 = scalar_lea.sflag [#allocation3], %s156
          %s158 = sand.u32 %s26, 1
          %s159 = smul.addr %s158, 16
          %s160 = scalar_lea.vmem [#allocation2], %s159
          %s161 = smul.u32 2, %s16
          %s163 = ssub.s32 256, 256
          %164 = vsyncadd %s157, %s163
          %s165 = smul.addr %s161, 128
          %s166 = scalar_lea.hbm %s0, %s165
          %s167 = sshll.u32 %s160, 4
          %s168 = int_to_ptr.vmem [resolvable:$true] %s167
          %173 = dma.hbm_to_vmem [thread:$0]  %s166, 256, %s168, %s157, 128, 128, 8
        $region28: #{tpu_custom_call.1} parent=23 // pred_fallthru
          _
      $region24: #{tpu_custom_call.1} parent=5 // pred_fallthru
        _
      %p174 = scmp.le.s32.totalorder 1, %s16
      %p175 = scmp.lt.s32.totalorder %s16, 3
      %p176 = pnand %p174, %p175
      %p177 = pneg %p176
      // Predicated region
      $region29: #{tpu_custom_call.1} parent=5 // pred_check
        _
      $region30: #{tpu_custom_call.1} parent=5 // pred_check_branch
        %179 = sbr.rel (%p176) target = $region32
      $region31: #{tpu_custom_call.1} parent=5 // pred_region
        %s180 = ssub.s32 %s16, 1
        %s181 = sand.u32 %s29, 1
        %s182 = scalar_lea.sflag [#allocation3], %s181
        %s183 = sand.u32 %s29, 1
        %s184 = smul.addr %s183, 16
        %s185 = scalar_lea.vmem [#allocation2], %s184
        // Predicated region
        $region33: #{tpu_custom_call.1} parent=31 // pred_check
          %p186 = pneg %p42
        $region34: #{tpu_custom_call.1} parent=31 // pred_check_branch
          %188 = sbr.rel (%p186) target = $region36
        $region35: #{tpu_custom_call.1} parent=31 // pred_region
          %189 = dma.done %s182, 256
        $region36: #{tpu_custom_call.1} parent=31 // pred_fallthru
          _
        // Predicated region
        $region37: #{tpu_custom_call.1} parent=31 // pred_check
          %p190 = pneg %p63
        $region38: #{tpu_custom_call.1} parent=31 // pred_check_branch
          %192 = sbr.rel (%p190) target = $region40
        $region39: #{tpu_custom_call.1} parent=31 // pred_region
          %193 = dma.done [#allocation6], 2048
        $region40: #{tpu_custom_call.1} parent=31 // pred_fallthru
          _
        // Predicated region
        $region41: #{tpu_custom_call.1} parent=31 // pred_check
          %p194 = pneg %p84
        $region42: #{tpu_custom_call.1} parent=31 // pred_check_branch
          %196 = sbr.rel (%p194) target = $region44
        $region43: #{tpu_custom_call.1} parent=31 // pred_region
          %197 = dma.done [#allocation6], 16
        $region44: #{tpu_custom_call.1} parent=31 // pred_fallthru
          _
        %s198 = sand.u32 %s29, 1
        %s199 = scalar_lea.sflag [#allocation3], %s198
        %s200 = sand.u32 %s29, 1
        %s201 = smul.addr %s200, 16
        %s202 = scalar_lea.vmem [#allocation2], %s201
        %p203 = pneg %p42
        %p204 = pneg %p39
        %p205 = pneg %p63
        %p206 = pneg %p60
        %p207 = pneg %p84
        %p208 = pneg %p81
        %p209 = pneg %p110
        %p210 = pneg %p107
        %s211 = sand.u32 %s97, 1
        %s212 = scalar_lea.sflag [#allocation4], %s211
        %s213 = sand.u32 %s97, 1
        %s214 = smul.addr %s213, 16
        %s215 = scalar_lea.vmem [#allocation8], %s214
        %s216 = smul.u32 2, %s21
        %s217 = smul.u32 2, %s21
        %v218 = vld [vmem:[%s185] sm:$0xff]
        %v219 = vld [vmem:[%s185 + $0x8] sm:$0xff]
        %v220 = vld [vmem:[#allocation5] sm:$0xff]
        %v221 = vld [vmem:[#allocation5 + $0x8] sm:$0xff]
        %v222 = vld [vmem:[#allocation5 + $0x10] sm:$0xff]
        %v223 = vld [vmem:[#allocation5 + $0x18] sm:$0xff]
        %v224 = vld [vmem:[#allocation5 + $0x20] sm:$0xff]
        %v225 = vld [vmem:[#allocation5 + $0x28] sm:$0xff]
        %v226 = vld [vmem:[#allocation5 + $0x30] sm:$0xff]
        %v227 = vld [vmem:[#allocation5 + $0x38] sm:$0xff]
        %v228 = vld [vmem:[#allocation5 + $0x40] sm:$0xff]
        %v229 = vld [vmem:[#allocation5 + $0x48] sm:$0xff]
        %v230 = vld [vmem:[#allocation5 + $0x50] sm:$0xff]
        %v231 = vld [vmem:[#allocation5 + $0x58] sm:$0xff]
        %v232 = vld [vmem:[#allocation5 + $0x60] sm:$0xff]
        %v233 = vld [vmem:[#allocation5 + $0x68] sm:$0xff]
        %v234 = vld [vmem:[#allocation5 + $0x70] sm:$0xff]
        %v235 = vld [vmem:[#allocation5 + $0x78] sm:$0xff]
        %v236 = vld [vmem:[#allocation7] sm:$0x1]
        %v238 = vlaneseq
        %v239 = vshrl.u32 %v238, 7
        %v240 = vsub.s32 0, %v239
        %v241 = vrot.slane %v236, %v240
        %243 = vmatprep.subr.mxu0 0.0
        %244 = vmatpush1.msra.mxu0 %v220
        %245 = vmatprep.subr.mxu0 0.0
        %246 = vmatpush1.msra.mxu0 %v221
        %247 = vmatprep.subr.mxu0 0.0
        %248 = vmatpush1.msra.mxu0 %v222
        %249 = vmatprep.subr.mxu0 0.0
        %250 = vmatpush1.msra.mxu0 %v223
        %251 = vmatprep.subr.mxu0 0.0
        %252 = vmatpush1.msra.mxu0 %v224
        %253 = vmatprep.subr.mxu0 0.0
        %254 = vmatpush1.msra.mxu0 %v225
        %255 = vmatprep.subr.mxu0 0.0
        %256 = vmatpush1.msra.mxu0 %v226
        %257 = vmatprep.subr.mxu0 0.0
        %258 = vmatpush1.msra.mxu0 %v227
        %259 = vmatprep.subr.mxu0 0.0
        %260 = vmatpush1.msra.mxu0 %v228
        %261 = vmatprep.subr.mxu0 0.0
        %262 = vmatpush1.msra.mxu0 %v229
        %263 = vmatprep.subr.mxu0 0.0
        %264 = vmatpush1.msra.mxu0 %v230
        %265 = vmatprep.subr.mxu0 0.0
        %266 = vmatpush1.msra.mxu0 %v231
        %267 = vmatprep.subr.mxu0 0.0
        %268 = vmatpush1.msra.mxu0 %v232
        %269 = vmatprep.subr.mxu0 0.0
        %270 = vmatpush1.msra.mxu0 %v233
        %271 = vmatprep.subr.mxu0 0.0
        %272 = vmatpush1.msra.mxu0 %v234
        %273 = vmatprep.subr.mxu0 0.0
        %274 = vmatpush1.msra.mxu0 %v235
        %275 = vmatprep.subr.mxu0 0.0
        %276 = vmatpush1.msra.mxu0 0.0
        %277 = vmatprep.subr.mxu0 0.0
        %278 = vmatpush1.msra.mxu0 0.0
        %279 = vmatprep.subr.mxu0 0.0
        %280 = vmatpush1.msra.mxu0 0.0
        %281 = vmatprep.subr.mxu0 0.0
        %282 = vmatpush1.msra.mxu0 0.0
        %283 = vmatprep.subr.mxu0 0.0
        %284 = vmatpush1.msra.mxu0 0.0
        %285 = vmatprep.subr.mxu0 0.0
        %286 = vmatpush1.msra.mxu0 0.0
        %287 = vmatprep.subr.mxu0 0.0
        %288 = vmatpush1.msra.mxu0 0.0
        %289 = vmatprep.subr.mxu0 0.0
        %290 = vmatpush1.msra.mxu0 0.0
        %291 = vmatprep.subr.mxu0 0.0
        %292 = vmatpush1.msra.mxu0 0.0
        %293 = vmatprep.subr.mxu0 0.0
        %294 = vmatpush1.msra.mxu0 0.0
        %295 = vmatprep.subr.mxu0 0.0
        %296 = vmatpush1.msra.mxu0 0.0
        %297 = vmatprep.subr.mxu0 0.0
        %298 = vmatpush1.msra.mxu0 0.0
        %299 = vmatprep.subr.mxu0 0.0
        %300 = vmatpush1.msra.mxu0 0.0
        %301 = vmatprep.subr.mxu0 0.0
        %302 = vmatpush1.msra.mxu0 0.0
        %303 = vmatprep.subr.mxu0 0.0
        %304 = vmatpush1.msra.mxu0 0.0
        %305 = vmatprep.subr.mxu0 0.0
        %306 = vmatpush1.msra.mxu0 0.0
        %307 = vmatprep.mubr.f32.mxu0 0.0
        %308 = vmatmul.mubr.f32.gmra.mrb[0].mxu0 %v218
        %v309 = vpop.f32.mrb[0].mxu0
        %v310 = vadd.f32 %v241, %v309
        %v311 = vpop.f32.mrb[0].mxu0
        %312 = vmatprep.mubr.f32.mxu0 0.0
        %313 = vmatmul.mubr.f32.gmra.mrb[0].mxu0 %v219
        %v314 = vpop.f32.mrb[0].mxu0
        %v315 = vadd.f32 %v241, %v314
        %v316 = vpop.f32.mrb[0].mxu0
        %317 = vdwg.mxu0
        %318 = vst [vmem:[%s215] sm:$0xff] %v310
        %319 = vst [vmem:[%s215 + $0x8] sm:$0xff] %v315
        %s320 = sand.u32 %s97, 1
        %s321 = scalar_lea.sflag [#allocation4], %s320
        %s322 = sand.u32 %s97, 1
        %s323 = smul.addr %s322, 16
        %s324 = scalar_lea.vmem [#allocation8], %s323
        // Predicated region
        $region45: #{tpu_custom_call.1} parent=31 // pred_check
          %p325 = pneg %p107
        $region46: #{tpu_custom_call.1} parent=31 // pred_check_branch
          %327 = sbr.rel (%p325) target = $region48
        $region47: #{tpu_custom_call.1} parent=31 // pred_region
          %s328 = smul.u32 2, %s21
          %s330 = ssub.s32 256, 256
          %331 = vsyncadd %s321, %s330
          %s332 = smul.addr %s328, 128
          %s333 = scalar_lea.hbm %s3, %s332
          %s334 = sshll.u32 %s324, 4
          %s335 = int_to_ptr.vmem [resolvable:$true] %s334
          %340 = dma.vmem_to_hbm [thread:$0]  %s335, 256, %s333, %s321, 128, 128, 8
        $region48: #{tpu_custom_call.1} parent=31 // pred_fallthru
          _
      $region32: #{tpu_custom_call.1} parent=5 // pred_fallthru
        _
      %p341 = scmp.le.s32.totalorder 2, %s16
      // Predicated region
      $region49: #{tpu_custom_call.1} parent=5 // pred_check
        %p342 = pneg %p341
      $region50: #{tpu_custom_call.1} parent=5 // pred_check_branch
        %344 = sbr.rel (%p342) target = $region52
      $region51: #{tpu_custom_call.1} parent=5 // pred_region
        %s345 = ssub.s32 %s16, 2
        // Predicated region
        $region53: #{tpu_custom_call.1} parent=51 // pred_check
          %p346 = pneg %p113
        $region54: #{tpu_custom_call.1} parent=51 // pred_check_branch
          %348 = sbr.rel (%p346) target = $region56
        $region55: #{tpu_custom_call.1} parent=51 // pred_region
          %s349 = sand.u32 %s98, 1
          %s350 = scalar_lea.sflag [#allocation4], %s349
          %s351 = sand.u32 %s98, 1
          %s352 = smul.addr %s351, 16
          %s353 = scalar_lea.vmem [#allocation8], %s352
          %354 = dma.done %s350, 256
        $region56: #{tpu_custom_call.1} parent=51 // pred_fallthru
          _
      $region52: #{tpu_custom_call.1} parent=5 // pred_fallthru
        _
    $region6: #{tpu_custom_call.1} parent=1 // loop_footer
      %s20 = sadd.s32 1, %s16
    $region7: #{tpu_custom_call.1} parent=1 // loop_footer_branch
      %15 = sbr.rel target = $region3
    $region8: #{tpu_custom_call.1} parent=1 // loop_exit
      _
    %355 = vsyncpa [#allocation3], 1
    %s356 = scalar_lea.sflag [#allocation3], 1
    %357 = vsyncpa %s356, 1
    %358 = vsyncpa [#allocation6], 1
    %359 = vsyncpa [#allocation4], 1
    %s360 = scalar_lea.sflag [#allocation4], 1
    %361 = vsyncpa %s360, 1

</llo_original>
